<compile_context>
chip_gen: v7x
topology: tpu7x:2x2x1
jax: 0.10.0
libtpu: 0.0.40
codegen_flags: <defaults>
</compile_context>

<pallas_src>
import functools

import jax
import jax.numpy as jnp
from jax.experimental import pallas as pl
from jax.experimental.pallas import tpu as pltpu


# ---------------------------------------------------------------------------
# Kernels
# ---------------------------------------------------------------------------
def _scn_kernel(x_ref, o_ref, *, pad_h, pad_w, eps):
    """Spatial contrast norm for a block of Bt batch elements.

    x_ref/o_ref block shape: (Bt, C, H, W).
    """
    x = x_ref[...].astype(jnp.float32)                 # (Bt, C, H, W)
    Bt, C, H, W = x.shape
    h = 2 * pad_h + 1
    w = 2 * pad_w + 1
    inv_c = 1.0 / float(C)

    # --- channel mean (one reduction over the slab) --------------------------
    mu = jnp.sum(x, axis=1) * inv_c                    # (Bt, H, W)  E_c[x]

    def box(m):
        """Separable reflect-padded box *mean* over an (h, w) window, stride 1."""
        if pad_h == 0 and pad_w == 0:
            return m
        if pad_h > 0:
            # Reflect-pad rows with ONE concat of full-width slabs, then h
            # shifted adds (sublane-axis slices).
            top = [m[:, pad_h - k:pad_h - k + 1, :] for k in range(pad_h)]   # rows pad_h..1
            bot = [m[:, H - 2 - k:H - 1 - k, :] for k in range(pad_h)]       # rows H-2..H-1-pad_h
            mp = jnp.concatenate(top + [m] + bot, axis=1)
            acc = mp[:, 0:H, :]
            for di in range(1, h):
                acc = acc + mp[:, di:di + H, :]
            m = acc
        if pad_w > 0:
            # Reflect-pad columns with ONE concat, then w shifted adds
            # (lane-axis slices).
            left = [m[:, :, pad_w - k:pad_w - k + 1] for k in range(pad_w)]
            right = [m[:, :, W - 2 - k:W - 1 - k] for k in range(pad_w)]
            mp = jnp.concatenate(left + [m] + right, axis=2)
            acc = mp[:, :, 0:W]
            for dj in range(1, w):
                acc = acc + mp[:, :, dj:dj + W]
            m = acc
        return m * (1.0 / float(h * w))

    xm = box(mu)                                       # smoothed local mean
    # Two-pass variance (exactly the PyTorch formulation, no cancellation);
    # `d` is reused for the final normalize so x is only traversed twice and
    # never divided per-element (rsqrt goes to the EUP slot).
    d = x - xm[:, None, :, :]                          # (Bt, C, H, W)
    var = jnp.sum(d * d, axis=1) * inv_c               # E_c[(x - xm)^2]
    a = jax.lax.rsqrt(box(var) + eps)                  # (Bt, H, W)
    o_ref[...] = (d * a[:, None, :, :]).astype(o_ref.dtype)


def _groupnorm1_kernel(x_ref, o_ref, *, eps):
    """group_norm with num_groups=1, no affine (the H<=8 and W<=8 fallback)."""
    x = x_ref[...].astype(jnp.float32)                 # (Bt, C, H, W)
    mu = jnp.mean(x, axis=(1, 2, 3), keepdims=True)
    var = jnp.mean((x - mu) ** 2, axis=(1, 2, 3), keepdims=True)
    o_ref[...] = ((x - mu) * jax.lax.rsqrt(var + eps)).astype(o_ref.dtype)


# ---------------------------------------------------------------------------
# Wrapper (= SpatialContrastNorm.forward)
# ---------------------------------------------------------------------------
def _choose_block_batch(B, C, H, W):
    """How many batch samples to process per grid step.

    Budget ~2 MiB of (8,128)-tile-padded fp32 per working copy: with the
    double-buffered input/output blocks plus a few live fp32 intermediates
    this stays well inside every generation's scoped VMEM (16 MiB v5e,
    32 MiB v6e/v7x; v7x physical VMEM is only 64 MiB), while blocks stay
    large enough (>~1 MiB) to sit near the measured HBM-roofline plateau.
    Also keep the batch grid >= 2 (preferably even) so v7x's two TensorCores
    both get work.
    """
    h_pad = -(-H // 8) * 8
    w_pad = -(-W // 128) * 128
    per_sample = C * h_pad * w_pad * 4
    budget = 2 * 1024 * 1024
    max_bt = max(1, budget // per_sample)
    if B >= 2:
        max_bt = min(max_bt, max(1, B // 2))
    divisors = [d for d in range(1, min(B, max_bt) + 1) if B % d == 0]
    bt = max(divisors)
    even = [d for d in divisors if (B // d) % 2 == 0]
    if even and 2 * max(even) >= bt:
        bt = max(even)                                  # prefer an even grid
    return bt


def spatial_contrast_norm(x, kernel_size=None, eps=1e-5):
    B, C, H, W = x.shape
    bt = _choose_block_batch(B, C, H, W)

    def _call(kern):
        spec = pl.BlockSpec((bt, C, H, W), lambda b: (b, 0, 0, 0))
        return pl.pallas_call(
            kern,
            out_shape=jax.ShapeDtypeStruct(x.shape, x.dtype),
            grid=(B // bt,),
            in_specs=[spec],
            out_specs=spec,
            compiler_params=pltpu.CompilerParams(
                dimension_semantics=("parallel",),
                vmem_limit_bytes=32 * 1024 * 1024),
        )(x)

    if kernel_size is None:
        kernel_size = (H // 8, W // 8)
        if H <= 8 and W <= 8:
            # nnF.group_norm(x, 1) uses its own default eps=1e-5 (not `eps`).
            return _call(functools.partial(_groupnorm1_kernel, eps=1e-5))

    if isinstance(kernel_size, (list, tuple)):
        pad_h = kernel_size[0] // 2
        pad_w = kernel_size[1] // 2
    else:
        pad_h = pad_w = kernel_size // 2
    # Reflect padding requires pad < spatial size (same constraint as F.pad).
    assert pad_h <= H - 1 and pad_w <= W - 1, "kernel_size too large for reflect pad"

    kern = functools.partial(_scn_kernel, pad_h=pad_h, pad_w=pad_w, eps=eps)
    return _call(kern)


class SpatialContrastNorm:
    """JAX/Pallas port of the PyTorch module (no learnable parameters)."""

    def __init__(self, kernel_size=None, eps=1e-5):
        self.kernel_size = kernel_size
        self.eps = eps

    def __call__(self, x):
        return spatial_contrast_norm(x, self.kernel_size, self.eps)


# ---------------------------------------------------------------------------
# Pure-JAX reference (for correctness check only)
# ---------------------------------------------------------------------------
def _ref_scn(x, kernel_size=None, eps=1e-5):
    B, C, H, W = x.shape
    if kernel_size is None:
        kernel_size = (H // 8, W // 8)
        if H <= 8 and W <= 8:
            mu = jnp.mean(x, axis=(1, 2, 3), keepdims=True)
            var = jnp.mean((x - mu) ** 2, axis=(1, 2, 3), keepdims=True)
            return (x - mu) / jnp.sqrt(var + 1e-5)
    if isinstance(kernel_size, (list, tuple)):
        ph, pw = kernel_size[0] // 2, kernel_size[1] // 2
    else:
        ph = pw = kernel_size // 2
    h, w = 2 * ph + 1, 2 * pw + 1

    def box(m):  # m: (B, 1, H, W)
        if h == 1 and w == 1:
            return m
        p = jnp.pad(m, ((0, 0), (0, 0), (ph, ph), (pw, pw)), mode="reflect")
        acc = sum(p[:, :, di:di + H, dj:dj + W]
                  for di in range(h) for dj in range(w))
        return acc / (h * w)

    xm = box(jnp.mean(x, axis=1, keepdims=True))
    d = x - xm
    xv = box(jnp.mean(d * d, axis=1, keepdims=True))
    return d / jnp.sqrt(xv + eps)


if __name__ == "__main__":
    key = jax.random.PRNGKey(0)
    k1, k2 = jax.random.split(key)

    # Main path: H=W=16 -> default kernel_size=(2,2) -> 3x3 reflect box filter.
    x = jax.random.normal(k1, (2, 4, 16, 16), dtype=jnp.float32)
    mod = SpatialContrastNorm()
    y = jax.block_until_ready(mod(x))
    y_ref = _ref_scn(x)
    assert y.shape == x.shape and y.dtype == x.dtype
    assert jnp.allclose(y, y_ref, atol=1e-4, rtol=1e-4), "main-path mismatch"

    # Explicit asymmetric kernel_size -> 3x5 window (pad_h=1, pad_w=2).
    mod35 = SpatialContrastNorm(kernel_size=(3, 5))
    y35 = jax.block_until_ready(mod35(x))
    y35_ref = _ref_scn(x, kernel_size=(3, 5))
    assert jnp.allclose(y35, y35_ref, atol=1e-4, rtol=1e-4), "kernel_size path mismatch"

    # Fallback path: H=W=8 -> group_norm with a single group.
    x_small = jax.random.normal(k2, (2, 4, 8, 8), dtype=jnp.float32)
    y_small = jax.block_until_ready(mod(x_small))
    y_small_ref = _ref_scn(x_small)
    assert jnp.allclose(y_small, y_small_ref, atol=1e-4, rtol=1e-4), "fallback mismatch"

    print("KERNEL_OK")
</pallas_src>

<mosaic_0001>
module attributes {stable_mosaic.version = 11 : i64} {
  func.func @_scn_kernel(%arg0: i32, %arg1: memref<1x4x16x16xf32, #tpu.memory_space<vmem>>, %arg2: memref<1x4x16x16xf32, #tpu.memory_space<vmem>>) attributes {dimension_semantics = [#tpu.dimension_semantics<parallel>], iteration_bounds = array<i64: 2>, scalar_prefetch = 0 : i64, scratch_operands = 0 : i64, tpu.core_type = #tpu.core_type<tc>, window_params = [{transform_indices = @transform_0, window_bounds = array<i64: 1, 4, 16, 16>}, {transform_indices = @transform_1, window_bounds = array<i64: 1, 4, 16, 16>}]} {
    %c0 = arith.constant 0 : index
    %c0_0 = arith.constant 0 : index
    %c0_1 = arith.constant 0 : index
    %c0_2 = arith.constant 0 : index
    %0 = vector.load %arg1[%c0, %c0_0, %c0_1, %c0_2] : memref<1x4x16x16xf32, #tpu.memory_space<vmem>>, vector<1x4x16x16xf32>
    %cst = arith.constant dense<0.000000e+00> : vector<1x16x16xf32>
    %1 = vector.multi_reduction <add>, %0, %cst [1] : vector<1x4x16x16xf32> to vector<1x16x16xf32>
    %cst_3 = arith.constant 2.500000e-01 : f32
    %2 = vector.broadcast %cst_3 : f32 to vector<1x16x16xf32>
    %3 = arith.mulf %1, %2 : vector<1x16x16xf32>
    %4 = vector.extract_strided_slice %3 {offsets = [0, 1, 0], sizes = [1, 1, 16], strides = [1, 1, 1]} : vector<1x16x16xf32> to vector<1x1x16xf32>
    %5 = vector.extract_strided_slice %3 {offsets = [0, 14, 0], sizes = [1, 1, 16], strides = [1, 1, 1]} : vector<1x16x16xf32> to vector<1x1x16xf32>
    %6 = tpu.concatenate %4, %3, %5 in 1 : vector<1x1x16xf32>, vector<1x16x16xf32>, vector<1x1x16xf32> -> vector<1x18x16xf32>
    %7 = vector.extract_strided_slice %6 {offsets = [0, 0, 0], sizes = [1, 16, 16], strides = [1, 1, 1]} : vector<1x18x16xf32> to vector<1x16x16xf32>
    %8 = vector.extract_strided_slice %6 {offsets = [0, 1, 0], sizes = [1, 16, 16], strides = [1, 1, 1]} : vector<1x18x16xf32> to vector<1x16x16xf32>
    %9 = arith.addf %7, %8 : vector<1x16x16xf32>
    %10 = vector.extract_strided_slice %6 {offsets = [0, 2, 0], sizes = [1, 16, 16], strides = [1, 1, 1]} : vector<1x18x16xf32> to vector<1x16x16xf32>
    %11 = arith.addf %9, %10 : vector<1x16x16xf32>
    %12 = vector.extract_strided_slice %11 {offsets = [0, 0, 1], sizes = [1, 16, 1], strides = [1, 1, 1]} : vector<1x16x16xf32> to vector<1x16x1xf32>
    %13 = vector.extract_strided_slice %11 {offsets = [0, 0, 14], sizes = [1, 16, 1], strides = [1, 1, 1]} : vector<1x16x16xf32> to vector<1x16x1xf32>
    %14 = tpu.concatenate %12, %11, %13 in 2 : vector<1x16x1xf32>, vector<1x16x16xf32>, vector<1x16x1xf32> -> vector<1x16x18xf32>
    %15 = vector.extract_strided_slice %14 {offsets = [0, 0, 0], sizes = [1, 16, 16], strides = [1, 1, 1]} : vector<1x16x18xf32> to vector<1x16x16xf32>
    %16 = vector.extract_strided_slice %14 {offsets = [0, 0, 1], sizes = [1, 16, 16], strides = [1, 1, 1]} : vector<1x16x18xf32> to vector<1x16x16xf32>
    %17 = arith.addf %15, %16 : vector<1x16x16xf32>
    %18 = vector.extract_strided_slice %14 {offsets = [0, 0, 2], sizes = [1, 16, 16], strides = [1, 1, 1]} : vector<1x16x18xf32> to vector<1x16x16xf32>
    %19 = arith.addf %17, %18 : vector<1x16x16xf32>
    %cst_4 = arith.constant 0.111111112 : f32
    %20 = vector.broadcast %cst_4 : f32 to vector<1x16x16xf32>
    %21 = arith.mulf %19, %20 : vector<1x16x16xf32>
    %22 = vector.shape_cast %21 : vector<1x16x16xf32> to vector<1x1x16x16xf32>
    %23 = vector.broadcast %22 : vector<1x1x16x16xf32> to vector<1x4x16x16xf32>
    %24 = arith.subf %0, %23 : vector<1x4x16x16xf32>
    %25 = arith.mulf %24, %24 : vector<1x4x16x16xf32>
    %cst_5 = arith.constant dense<0.000000e+00> : vector<1x16x16xf32>
    %26 = vector.multi_reduction <add>, %25, %cst_5 [1] : vector<1x4x16x16xf32> to vector<1x16x16xf32>
    %cst_6 = arith.constant 2.500000e-01 : f32
    %27 = vector.broadcast %cst_6 : f32 to vector<1x16x16xf32>
    %28 = arith.mulf %26, %27 : vector<1x16x16xf32>
    %29 = vector.extract_strided_slice %28 {offsets = [0, 1, 0], sizes = [1, 1, 16], strides = [1, 1, 1]} : vector<1x16x16xf32> to vector<1x1x16xf32>
    %30 = vector.extract_strided_slice %28 {offsets = [0, 14, 0], sizes = [1, 1, 16], strides = [1, 1, 1]} : vector<1x16x16xf32> to vector<1x1x16xf32>
    %31 = tpu.concatenate %29, %28, %30 in 1 : vector<1x1x16xf32>, vector<1x16x16xf32>, vector<1x1x16xf32> -> vector<1x18x16xf32>
    %32 = vector.extract_strided_slice %31 {offsets = [0, 0, 0], sizes = [1, 16, 16], strides = [1, 1, 1]} : vector<1x18x16xf32> to vector<1x16x16xf32>
    %33 = vector.extract_strided_slice %31 {offsets = [0, 1, 0], sizes = [1, 16, 16], strides = [1, 1, 1]} : vector<1x18x16xf32> to vector<1x16x16xf32>
    %34 = arith.addf %32, %33 : vector<1x16x16xf32>
    %35 = vector.extract_strided_slice %31 {offsets = [0, 2, 0], sizes = [1, 16, 16], strides = [1, 1, 1]} : vector<1x18x16xf32> to vector<1x16x16xf32>
    %36 = arith.addf %34, %35 : vector<1x16x16xf32>
    %37 = vector.extract_strided_slice %36 {offsets = [0, 0, 1], sizes = [1, 16, 1], strides = [1, 1, 1]} : vector<1x16x16xf32> to vector<1x16x1xf32>
    %38 = vector.extract_strided_slice %36 {offsets = [0, 0, 14], sizes = [1, 16, 1], strides = [1, 1, 1]} : vector<1x16x16xf32> to vector<1x16x1xf32>
    %39 = tpu.concatenate %37, %36, %38 in 2 : vector<1x16x1xf32>, vector<1x16x16xf32>, vector<1x16x1xf32> -> vector<1x16x18xf32>
    %40 = vector.extract_strided_slice %39 {offsets = [0, 0, 0], sizes = [1, 16, 16], strides = [1, 1, 1]} : vector<1x16x18xf32> to vector<1x16x16xf32>
    %41 = vector.extract_strided_slice %39 {offsets = [0, 0, 1], sizes = [1, 16, 16], strides = [1, 1, 1]} : vector<1x16x18xf32> to vector<1x16x16xf32>
    %42 = arith.addf %40, %41 : vector<1x16x16xf32>
    %43 = vector.extract_strided_slice %39 {offsets = [0, 0, 2], sizes = [1, 16, 16], strides = [1, 1, 1]} : vector<1x16x18xf32> to vector<1x16x16xf32>
    %44 = arith.addf %42, %43 : vector<1x16x16xf32>
    %cst_7 = arith.constant 0.111111112 : f32
    %45 = vector.broadcast %cst_7 : f32 to vector<1x16x16xf32>
    %46 = arith.mulf %44, %45 : vector<1x16x16xf32>
    %cst_8 = arith.constant 9.99999974E-6 : f32
    %47 = vector.broadcast %cst_8 : f32 to vector<1x16x16xf32>
    %48 = arith.addf %46, %47 : vector<1x16x16xf32>
    %49 = math.rsqrt %48 : vector<1x16x16xf32>
    %50 = vector.shape_cast %49 : vector<1x16x16xf32> to vector<1x1x16x16xf32>
    %51 = vector.broadcast %50 : vector<1x1x16x16xf32> to vector<1x4x16x16xf32>
    %52 = arith.mulf %24, %51 : vector<1x4x16x16xf32>
    %c0_9 = arith.constant 0 : index
    %c0_10 = arith.constant 0 : index
    %c0_11 = arith.constant 0 : index
    %c0_12 = arith.constant 0 : index
    %53 = vector.load %arg2[%c0_9, %c0_10, %c0_11, %c0_12] : memref<1x4x16x16xf32, #tpu.memory_space<vmem>>, vector<1x4x16x16xf32>
    tpu.vector_store %arg2[%c0_9, %c0_10, %c0_11, %c0_12], %52 {strides = array<i32>} : memref<1x4x16x16xf32, #tpu.memory_space<vmem>>, vector<1x4x16x16xf32>,
    return
  }
  func.func @transform_0(%arg0: i32) -> (i32, i32, i32, i32) {
    %c0_i32 = arith.constant 0 : i32
    %c0_i32_0 = arith.constant 0 : i32
    %c0_i32_1 = arith.constant 0 : i32
    %c0_i32_2 = arith.constant 0 : i32
    return %arg0, %c0_i32, %c0_i32_0, %c0_i32_1 : i32, i32, i32, i32
  }
  func.func @transform_1(%arg0: i32) -> (i32, i32, i32, i32) {
    %c0_i32 = arith.constant 0 : i32
    %c0_i32_0 = arith.constant 0 : i32
    %c0_i32_1 = arith.constant 0 : i32
    %c0_i32_2 = arith.constant 0 : i32
    return %arg0, %c0_i32, %c0_i32_0, %c0_i32_1 : i32, i32, i32, i32
  }
}

</mosaic_0001>

<llo_original>
// kernel: tpu_custom_call.1
$region0: #{tpu_custom_call.1}
  #allocation0 [shape = 'u32[]', space=smem, size = 0x4, offset = 0x4, fixed_abs, tag = 'smem constant byte address 0x4 - core index']
  #allocation1 [shape = 'u32[144,128]{1,0:T(1,128)}', space=vmem, size = 0x12000, scoped, tag = 'internal scratch']
  %s0 = inlined_call_operand.hbm [shape: f32[2,4,16,16], index: 0, kind: input, shape index: {}]
  %s1 = inlined_call_operand.hbm [shape: f32[2,4,16,16], index: 1, kind: output, shape index: {}]
  %s2 = sld [smem:[#allocation0]]
  $region41: #{tpu_custom_call.1} parent=0
    _
  %s4 = ssub.s32 1, %s2
  %s5 = scalar_select 0, %s4, %s2
  $region1: #{tpu_custom_call.1} parent=0
    #allocation2 [shape = 'u8[65536]{0}', space=vmem, size = 0x10000, scoped, tag = 'input window, operand 0']
    #allocation3 [shape = 's32[2]{0}', space=sflag, size = 0x8, scoped, tag = 'scoped memory for tpu_custom_call.1']
    #allocation4 [shape = 's32[2]{0}', space=sflag, size = 0x8, scoped, tag = 'scoped memory for tpu_custom_call.1']
    #allocation5 [shape = 'u8[65536]{0}', space=vmem, size = 0x10000, scoped, tag = 'output window, operand 0']
    %6 = vsyncpa [#allocation3], 0
    %s7 = scalar_lea.sflag [#allocation3], 1
    %8 = vsyncpa %s7, 0
    %9 = vsyncpa [#allocation4], 0
    %s10 = scalar_lea.sflag [#allocation4], 1
    %11 = vsyncpa %s10, 0
    loop: start=0, step=1, limit=4
    $region2: #{tpu_custom_call.1} parent=1 // loop_pre_header
      _
    $region3: #{tpu_custom_call.1} parent=1 // loop_header
      %s13 = sphi 0, %s17
      %p14 = scmp.ge.s32.totalorder %s13, 4
      %s23 = sphi 0, %s25
      %s26 = sphi 0, %s23
      %s27 = sphi 0, %s26
      %s43 = sphi 0, %s27
      %s49 = sphi 0, %s51
      %s52 = sphi 0, %s49
      %s53 = sphi 0, %s52
      %s69 = sphi 0, %s53
    $region4: #{tpu_custom_call.1} parent=1 // loop_header_branch
      %16 = sbr.rel (%p14) target = $region8
    $region5: #{tpu_custom_call.1} parent=1 // loop_body
      %s18 = ssub.s32 %s13, 1
      %s19 = ssub.s32 %s13, 2
      %s20 = sadd.s32 %s13, 1
      %s21 = ssub.s32 %s13, %s20
      %p22 = scmp.eq.s32.totalorder %s21, 0
      %s24 = sadd.s32 %s23, 1
      %s25 = scalar_select %p22, %s23, %s24
      %p28 = pneg %p22
      %p29 = scmp.eq.s32.totalorder %s13, 1
      %p30 = por %p28, %p29
      %p31 = scmp.ne.s32.totalorder %s23, %s26
      %p32 = scmp.eq.s32.totalorder %s13, 0
      %p33 = por %p31, %p32
      %p34 = scmp.ne.s32.totalorder %s23, %s26
      %p35 = scmp.eq.s32.totalorder %s18, 1
      %p36 = por %p34, %p35
      %p37 = scmp.ne.s32.totalorder %s26, %s27
      %p38 = scmp.eq.s32.totalorder %s18, 0
      %p39 = por %p37, %p38
      %p40 = scmp.ne.s32.totalorder %s26, %s27
      %p41 = scmp.eq.s32.totalorder %s19, 1
      %p42 = por %p40, %p41
      %p44 = scmp.ne.s32.totalorder %s27, %s43
      %p45 = scmp.eq.s32.totalorder %s19, 0
      %p46 = por %p44, %p45
      %s47 = ssub.s32 %s13, %s20
      %p48 = scmp.eq.s32.totalorder %s47, 0
      %s50 = sadd.s32 %s49, 1
      %s51 = scalar_select %p48, %s49, %s50
      %p54 = pneg %p48
      %p55 = scmp.eq.s32.totalorder %s13, 1
      %p56 = por %p54, %p55
      %p57 = scmp.ne.s32.totalorder %s49, %s52
      %p58 = scmp.eq.s32.totalorder %s13, 0
      %p59 = por %p57, %p58
      %p60 = scmp.ne.s32.totalorder %s49, %s52
      %p61 = scmp.eq.s32.totalorder %s18, 1
      %p62 = por %p60, %p61
      %p63 = scmp.ne.s32.totalorder %s52, %s53
      %p64 = scmp.eq.s32.totalorder %s18, 0
      %p65 = por %p63, %p64
      %p66 = scmp.ne.s32.totalorder %s52, %s53
      %p67 = scmp.eq.s32.totalorder %s19, 1
      %p68 = por %p66, %p67
      %p70 = scmp.ne.s32.totalorder %s53, %s69
      %p71 = scmp.eq.s32.totalorder %s19, 0
      %p72 = por %p70, %p71
      %p73 = scmp.le.s32.totalorder 1, %s13
      %p74 = scmp.lt.s32.totalorder %s13, 3
      %p75 = pnand %p73, %p74
      %p76 = pneg %p75
      // Predicated region
      $region9: #{tpu_custom_call.1} parent=5 // pred_check
        _
      $region10: #{tpu_custom_call.1} parent=5 // pred_check_branch
        %78 = sbr.rel (%p75) target = $region12
      $region11: #{tpu_custom_call.1} parent=5 // pred_region
        %s79 = ssub.s32 %s13, 1
      $region12: #{tpu_custom_call.1} parent=5 // pred_fallthru
        _
      %p80 = scmp.lt.s32.totalorder %s13, 2
      // Predicated region
      $region13: #{tpu_custom_call.1} parent=5 // pred_check
        %p81 = pneg %p80
      $region14: #{tpu_custom_call.1} parent=5 // pred_check_branch
        %83 = sbr.rel (%p81) target = $region16
      $region15: #{tpu_custom_call.1} parent=5 // pred_region
        // Predicated region
        $region17: #{tpu_custom_call.1} parent=15 // pred_check
          %p84 = pneg %p33
        $region18: #{tpu_custom_call.1} parent=15 // pred_check_branch
          %86 = sbr.rel (%p84) target = $region20
        $region19: #{tpu_custom_call.1} parent=15 // pred_region
          %s87 = sand.u32 %s23, 1
          %s88 = scalar_lea.sflag [#allocation3], %s87
          %s89 = sand.u32 %s23, 1
          %s90 = smul.addr %s89, 64
          %s91 = scalar_lea.vmem [#allocation2], %s90
          %s93 = ssub.s32 1024, 1024
          %94 = vsyncadd %s88, %s93
          %s95 = smul.addr %s13, 8
          %s96 = smul.addr %s95, 128
          %s97 = scalar_lea.hbm %s0, %s96
          %s98 = sshll.u32 %s91, 4
          %s99 = int_to_ptr.vmem [resolvable:$true] %s98
          %104 = dma.hbm_to_vmem [thread:$0]  %s97, 1024, %s99, %s88, 128, 128, 8
        $region20: #{tpu_custom_call.1} parent=15 // pred_fallthru
          _
      $region16: #{tpu_custom_call.1} parent=5 // pred_fallthru
        _
      %p105 = scmp.le.s32.totalorder 1, %s13
      %p106 = scmp.lt.s32.totalorder %s13, 3
      %p107 = pnand %p105, %p106
      %p108 = pneg %p107
      // Predicated region
      $region21: #{tpu_custom_call.1} parent=5 // pred_check
        _
      $region22: #{tpu_custom_call.1} parent=5 // pred_check_branch
        %110 = sbr.rel (%p107) target = $region24
      $region23: #{tpu_custom_call.1} parent=5 // pred_region
        %s111 = ssub.s32 %s13, 1
        %s112 = sand.u32 %s26, 1
        %s113 = scalar_lea.sflag [#allocation3], %s112
        %s114 = sand.u32 %s26, 1
        %s115 = smul.addr %s114, 64
        %s116 = scalar_lea.vmem [#allocation2], %s115
        // Predicated region
        $region25: #{tpu_custom_call.1} parent=23 // pred_check
          %p117 = pneg %p39
        $region26: #{tpu_custom_call.1} parent=23 // pred_check_branch
          %119 = sbr.rel (%p117) target = $region28
        $region27: #{tpu_custom_call.1} parent=23 // pred_region
          %120 = dma.done %s113, 1024
        $region28: #{tpu_custom_call.1} parent=23 // pred_fallthru
          _
        %s121 = sand.u32 %s26, 1
        %s122 = scalar_lea.sflag [#allocation3], %s121
        %s123 = sand.u32 %s26, 1
        %s124 = smul.addr %s123, 64
        %s125 = scalar_lea.vmem [#allocation2], %s124
        %p126 = pneg %p39
        %p127 = pneg %p36
        %p128 = pneg %p65
        %p129 = pneg %p62
        %s130 = sand.u32 %s52, 1
        %s131 = scalar_lea.sflag [#allocation4], %s130
        %s132 = sand.u32 %s52, 1
        %s133 = smul.addr %s132, 64
        %s134 = scalar_lea.vmem [#allocation5], %s133
        %v135 = vld [vmem:[%s116] sm:$0xff]
        %v136 = vld [vmem:[%s116 + $0x8] sm:$0xff]
        %v137 = vld [vmem:[%s116 + $0x10] sm:$0xff]
        %v138 = vld [vmem:[%s116 + $0x18] sm:$0xff]
        %v139 = vld [vmem:[%s116 + $0x20] sm:$0xff]
        %v140 = vld [vmem:[%s116 + $0x28] sm:$0xff]
        %v141 = vld [vmem:[%s116 + $0x30] sm:$0xff]
        %v142 = vld [vmem:[%s116 + $0x38] sm:$0xff]
        %vm143 = vcmask 130048
        %v144 = vsel %vm143, %v135, 0.0
        %v145 = vsel %vm143, %v137, 0.0
        %v146 = vadd.f32 %v144, %v145
        %v147 = vsel %vm143, %v139, 0.0
        %v148 = vadd.f32 %v146, %v147
        %v149 = vsel %vm143, %v141, 0.0
        %v150 = vadd.f32 %v148, %v149
        %v151 = vsel %vm143, %v136, 0.0
        %v152 = vsel %vm143, %v138, 0.0
        %v153 = vadd.f32 %v151, %v152
        %v154 = vsel %vm143, %v140, 0.0
        %v155 = vadd.f32 %v153, %v154
        %v156 = vsel %vm143, %v142, 0.0
        %v157 = vadd.f32 %v155, %v156
        %v158 = vmul.f32 %v150, 0.25
        %v159 = vmul.f32 %v157, 0.25
        %v161 = vrot.slane %v158, 1
        %vm164 = vcmask 1040384
        %v165 = vrot.slane %v158, 7
        %v166 = vrot.slane %v159, 7
        %v167 = vsel %vm164, %v165, %v166
        %v171 = vrot.slane %v159, 5
        %v173 = vsel %vm164, %v161, %v165
        %v174 = vsel %vm164, %v166, %v171
        %vm177 = vcmask 1046528
        %v178 = vrot.slane %v173, 1
        %v179 = vrot.slane %v167, 1
        %v180 = vsel %vm177, %v178, %v179
        %v181 = vrot.slane %v174, 1
        %v182 = vsel %vm177, %v179, %v181
        %v185 = vadd.f32 %v173, %v180
        %v186 = vadd.f32 %v167, %v182
        %vm187 = vcmask 1045504
        %v188 = vrot.slane %v173, 2
        %v189 = vrot.slane %v167, 2
        %v190 = vsel %vm187, %v188, %v189
        %v191 = vrot.slane %v174, 2
        %v192 = vsel %vm187, %v189, %v191
        %v195 = vadd.f32 %v185, %v190
        %v196 = vadd.f32 %v186, %v192
        %199 = vrot.lane.b32.xlu0 %v195, 127
        %v200 = vpop.permute.xlu0 %199
        %201 = vrot.lane.b32.xlu0 %v196, 127
        %v202 = vpop.permute.xlu0 %201
        %205 = vrot.lane.b32.xlu0 %v195, 1
        %v206 = vpop.permute.xlu0 %205
        %207 = vrot.lane.b32.xlu0 %v196, 1
        %v208 = vpop.permute.xlu0 %207
        %211 = vrot.lane.b32.xlu0 %v195, 3
        %v212 = vpop.permute.xlu0 %211
        %213 = vrot.lane.b32.xlu0 %v196, 3
        %v214 = vpop.permute.xlu0 %213
        %vm217 = vcmask 7168
        %v218 = vsel %vm217, %v200, %v206
        %v219 = vsel %vm217, %v202, %v208
        %vm220 = vcmask 138240
        %v221 = vsel %vm220, %v218, %v212
        %v222 = vsel %vm220, %v219, %v214
        %225 = vrot.lane.b32.xlu0 %v221, 127
        %v226 = vpop.permute.xlu0 %225
        %227 = vrot.lane.b32.xlu0 %v222, 127
        %v228 = vpop.permute.xlu0 %227
        %v231 = vadd.f32 %v221, %v226
        %v232 = vadd.f32 %v222, %v228
        %233 = vrot.lane.b32.xlu0 %v221, 126
        %v234 = vpop.permute.xlu0 %233
        %235 = vrot.lane.b32.xlu0 %v222, 126
        %v236 = vpop.permute.xlu0 %235
        %v239 = vadd.f32 %v231, %v234
        %v240 = vadd.f32 %v232, %v236
        %v241 = vmul.f32 %v239, 0.11111111
        %v242 = vmul.f32 %v240, 0.11111111
        %v243 = vsub.f32 %v135, %v241
        %v244 = vsub.f32 %v136, %v242
        %v245 = vsub.f32 %v137, %v241
        %v246 = vsub.f32 %v138, %v242
        %v247 = vsub.f32 %v139, %v241
        %v248 = vsub.f32 %v140, %v242
        %v249 = vsub.f32 %v141, %v241
        %v250 = vsub.f32 %v142, %v242
        %v251 = vmul.f32 %v243, %v243
        %v252 = vmul.f32 %v244, %v244
        %v253 = vmul.f32 %v245, %v245
        %v254 = vmul.f32 %v246, %v246
        %v255 = vmul.f32 %v247, %v247
        %v256 = vmul.f32 %v248, %v248
        %v257 = vmul.f32 %v249, %v249
        %v258 = vmul.f32 %v250, %v250
        %v259 = vsel %vm143, %v251, 0.0
        %v260 = vsel %vm143, %v253, 0.0
        %v261 = vadd.f32 %v259, %v260
        %v262 = vsel %vm143, %v255, 0.0
        %v263 = vadd.f32 %v261, %v262
        %v264 = vsel %vm143, %v257, 0.0
        %v265 = vadd.f32 %v263, %v264
        %v266 = vsel %vm143, %v252, 0.0
        %v267 = vsel %vm143, %v254, 0.0
        %v268 = vadd.f32 %v266, %v267
        %v269 = vsel %vm143, %v256, 0.0
        %v270 = vadd.f32 %v268, %v269
        %v271 = vsel %vm143, %v258, 0.0
        %v272 = vadd.f32 %v270, %v271
        %v273 = vmul.f32 %v265, 0.25
        %v274 = vmul.f32 %v272, 0.25
        %v276 = vrot.slane %v273, 1
        %v279 = vrot.slane %v273, 7
        %v280 = vrot.slane %v274, 7
        %v281 = vsel %vm164, %v279, %v280
        %v285 = vrot.slane %v274, 5
        %v287 = vsel %vm164, %v276, %v279
        %v288 = vsel %vm164, %v280, %v285
        %v291 = vrot.slane %v287, 1
        %v292 = vrot.slane %v281, 1
        %v293 = vsel %vm177, %v291, %v292
        %v294 = vrot.slane %v288, 1
        %v295 = vsel %vm177, %v292, %v294
        %v298 = vadd.f32 %v287, %v293
        %v299 = vadd.f32 %v281, %v295
        %v300 = vrot.slane %v287, 2
        %v301 = vrot.slane %v281, 2
        %v302 = vsel %vm187, %v300, %v301
        %v303 = vrot.slane %v288, 2
        %v304 = vsel %vm187, %v301, %v303
        %v307 = vadd.f32 %v298, %v302
        %v308 = vadd.f32 %v299, %v304
        %311 = vrot.lane.b32.xlu0 %v307, 127
        %v312 = vpop.permute.xlu0 %311
        %313 = vrot.lane.b32.xlu0 %v308, 127
        %v314 = vpop.permute.xlu0 %313
        %317 = vrot.lane.b32.xlu0 %v307, 1
        %v318 = vpop.permute.xlu0 %317
        %319 = vrot.lane.b32.xlu0 %v308, 1
        %v320 = vpop.permute.xlu0 %319
        %323 = vrot.lane.b32.xlu0 %v307, 3
        %v324 = vpop.permute.xlu0 %323
        %325 = vrot.lane.b32.xlu0 %v308, 3
        %v326 = vpop.permute.xlu0 %325
        %v329 = vsel %vm217, %v312, %v318
        %v330 = vsel %vm217, %v314, %v320
        %v331 = vsel %vm220, %v329, %v324
        %v332 = vsel %vm220, %v330, %v326
        %335 = vrot.lane.b32.xlu0 %v331, 127
        %v336 = vpop.permute.xlu0 %335
        %337 = vrot.lane.b32.xlu0 %v332, 127
        %v338 = vpop.permute.xlu0 %337
        %v341 = vadd.f32 %v331, %v336
        %v342 = vadd.f32 %v332, %v338
        %343 = vrot.lane.b32.xlu0 %v331, 126
        %v344 = vpop.permute.xlu0 %343
        %345 = vrot.lane.b32.xlu0 %v332, 126
        %v346 = vpop.permute.xlu0 %345
        %v349 = vadd.f32 %v341, %v344
        %v350 = vadd.f32 %v342, %v346
        %v351 = vmul.f32 %v349, 0.11111111
        %v352 = vmul.f32 %v350, 0.11111111
        %v353 = vadd.f32 %v351, 1e-05
        %v354 = vadd.f32 %v352, 1e-05
        %v355 = vrsqrt.pop %v353
        %v356 = vrsqrt.pop %v354
        %v357 = vmul.f32 %v243, %v355
        %v358 = vmul.f32 %v244, %v356
        %v359 = vmul.f32 %v245, %v355
        %v360 = vmul.f32 %v246, %v356
        %v361 = vmul.f32 %v247, %v355
        %v362 = vmul.f32 %v248, %v356
        %v363 = vmul.f32 %v249, %v355
        %v364 = vmul.f32 %v250, %v356
        %365 = vst.msk [vmem:[%s134] sm:$0xff] %vm143, %v357
        %366 = vst.msk [vmem:[%s134 + $0x8] sm:$0xff] %vm143, %v358
        %367 = vst.msk [vmem:[%s134 + $0x10] sm:$0xff] %vm143, %v359
        %368 = vst.msk [vmem:[%s134 + $0x18] sm:$0xff] %vm143, %v360
        %369 = vst.msk [vmem:[%s134 + $0x20] sm:$0xff] %vm143, %v361
        %370 = vst.msk [vmem:[%s134 + $0x28] sm:$0xff] %vm143, %v362
        %371 = vst.msk [vmem:[%s134 + $0x30] sm:$0xff] %vm143, %v363
        %372 = vst.msk [vmem:[%s134 + $0x38] sm:$0xff] %vm143, %v364
        %s373 = sand.u32 %s52, 1
        %s374 = scalar_lea.sflag [#allocation4], %s373
        %s375 = sand.u32 %s52, 1
        %s376 = smul.addr %s375, 64
        %s377 = scalar_lea.vmem [#allocation5], %s376
        // Predicated region
        $region29: #{tpu_custom_call.1} parent=23 // pred_check
          %p378 = pneg %p62
        $region30: #{tpu_custom_call.1} parent=23 // pred_check_branch
          %380 = sbr.rel (%p378) target = $region32
        $region31: #{tpu_custom_call.1} parent=23 // pred_region
          %s382 = ssub.s32 1024, 1024
          %383 = vsyncadd %s374, %s382
          %s384 = smul.addr %s18, 8
          %s385 = smul.addr %s384, 128
          %s386 = scalar_lea.hbm %s1, %s385
          %s387 = sshll.u32 %s377, 4
          %s388 = int_to_ptr.vmem [resolvable:$true] %s387
          %393 = dma.vmem_to_hbm [thread:$0]  %s388, 1024, %s386, %s374, 128, 128, 8
        $region32: #{tpu_custom_call.1} parent=23 // pred_fallthru
          _
      $region24: #{tpu_custom_call.1} parent=5 // pred_fallthru
        _
      %p394 = scmp.le.s32.totalorder 2, %s13
      // Predicated region
      $region33: #{tpu_custom_call.1} parent=5 // pred_check
        %p395 = pneg %p394
      $region34: #{tpu_custom_call.1} parent=5 // pred_check_branch
        %397 = sbr.rel (%p395) target = $region36
      $region35: #{tpu_custom_call.1} parent=5 // pred_region
        %s398 = ssub.s32 %s13, 2
        // Predicated region
        $region37: #{tpu_custom_call.1} parent=35 // pred_check
          %p399 = pneg %p68
        $region38: #{tpu_custom_call.1} parent=35 // pred_check_branch
          %401 = sbr.rel (%p399) target = $region40
        $region39: #{tpu_custom_call.1} parent=35 // pred_region
          %s402 = sand.u32 %s53, 1
          %s403 = scalar_lea.sflag [#allocation4], %s402
          %s404 = sand.u32 %s53, 1
          %s405 = smul.addr %s404, 64
          %s406 = scalar_lea.vmem [#allocation5], %s405
          %407 = dma.done %s403, 1024
        $region40: #{tpu_custom_call.1} parent=35 // pred_fallthru
          _
      $region36: #{tpu_custom_call.1} parent=5 // pred_fallthru
        _
    $region6: #{tpu_custom_call.1} parent=1 // loop_footer
      %s17 = sadd.s32 1, %s13
    $region7: #{tpu_custom_call.1} parent=1 // loop_footer_branch
      %12 = sbr.rel target = $region3
    $region8: #{tpu_custom_call.1} parent=1 // loop_exit
      _
    %408 = vsyncpa [#allocation3], 1
    %s409 = scalar_lea.sflag [#allocation3], 1
    %410 = vsyncpa %s409, 1
    %411 = vsyncpa [#allocation4], 1
    %s412 = scalar_lea.sflag [#allocation4], 1
    %413 = vsyncpa %s412, 1

</llo_original>
